<compile_context>
chip_gen: v5e
topology: v5e:2x2
jax: 0.10.0
libtpu: 0.0.40
codegen_flags: <defaults>
</compile_context>

<pallas_src>
import math

import jax
import jax.numpy as jnp
from jax import lax
from jax.experimental import pallas as pl
from jax.experimental.pallas import tpu as pltpu


# ---------------------------------------------------------------------------
# Tiling configuration (f32).
# ---------------------------------------------------------------------------
_TM_MAX = 256            # M = batch, small; multiple of 8
_TN_MAX = 1024           # lane-dim tile cap, multiple of 128
_TK_MAX = 1024           # contraction tile cap, multiple of 128
_X_RESIDENT_BYTES = 8 * 1024 * 1024     # budget for the double-buffered x block
_VMEM_LIMIT = 32 * 1024 * 1024          # valid scoped limit on v5e/v6e/v7x


def _round_up(v, m):
    return ((v + m - 1) // m) * m


def _even_split(dim, max_tile, align):
    """Split `dim` into the fewest tiles <= max_tile, each a multiple of
    `align`, minimizing padding.  Returns (tile, num_tiles, padded_dim)."""
    n = max(1, -(-dim // max_tile))             # ceil div
    tile = _round_up(-(-dim // n), align)
    while tile > max_tile:                      # safety (rare)
        n += 1
        tile = _round_up(-(-dim // n), align)
    return tile, n, tile * n


# ---------------------------------------------------------------------------
# Kernels.  Both compute  out = x @ w.T  with w in native (N, K) layout.
# ---------------------------------------------------------------------------
_DOT_DIMS = (((1,), (1,)), ((), ()))   # contract last dim of x with last dim of w


def _single_block_kernel(x_ref, w_ref, o_ref):
    o_ref[...] = lax.dot_general(
        x_ref[...], w_ref[...],
        dimension_numbers=_DOT_DIMS,
        preferred_element_type=jnp.float32,
    ).astype(o_ref.dtype)


def _make_matmul_kernel(tk, x_resident):
    """General tiled kernel: accumulate into the resident f32 output block
    across the (last, 'arbitrary') K grid axis."""

    def kernel(x_ref, w_ref, o_ref):
        k = pl.program_id(2)

        @pl.when(k == 0)
        def _():
            o_ref[...] = jnp.zeros_like(o_ref)

        if x_resident:
            start = pl.multiple_of(k * tk, tk)
            x_tile = x_ref[:, pl.ds(start, tk)]
        else:
            x_tile = x_ref[...]

        o_ref[...] += lax.dot_general(
            x_tile, w_ref[...],
            dimension_numbers=_DOT_DIMS,
            preferred_element_type=jnp.float32,
        ).astype(o_ref.dtype)

    return kernel


# ---------------------------------------------------------------------------
# Wrapper: out = x @ w.T, x:(M, K), w:(N, K)  (w in native layout).
# ---------------------------------------------------------------------------
def _pallas_matmul_nt(x, w):
    M, K = x.shape
    N, Kw = w.shape
    assert K == Kw, (K, Kw)

    tm, n_m, Mp = _even_split(M, _TM_MAX, 8)
    tk, n_k, Kp = _even_split(K, _TK_MAX, 128)
    tn, n_n, Np = _even_split(N, _TN_MAX, 128)

    # v7x megacore: guarantee >=2 blocks on a "parallel" axis when it costs
    # no extra padding (both TensorCores get work).
    if n_m == 1 and n_n == 1 and N >= 512 and N % 256 == 0:
        tn, n_n, Np = N // 2, 2, N

    # Pad only when needed (padding is wasted HBM bandwidth on W).
    xp = x if (Mp == M and Kp == K) else jnp.pad(x, ((0, Mp - M), (0, Kp - K)))
    wp = w if (Np == N and Kp == K) else jnp.pad(w, ((0, Np - N), (0, Kp - K)))

    itemsize = x.dtype.itemsize
    cost = pl.CostEstimate(
        flops=2 * M * N * K,
        transcendentals=0,
        bytes_accessed=itemsize * (M * K + N * K + M * N),
    )

    if n_m == 1 and n_n == 1 and n_k == 1:
        # Small-layer fast path: one DMA per operand + one MXU call.
        out = pl.pallas_call(
            _single_block_kernel,
            out_shape=jax.ShapeDtypeStruct((Mp, Np), x.dtype),
            grid_spec=pltpu.PrefetchScalarGridSpec(
                num_scalar_prefetch=0,
                grid=(1,),
                in_specs=[
                    pl.BlockSpec((Mp, Kp), lambda i: (0, 0)),
                    pl.BlockSpec((Np, Kp), lambda i: (0, 0)),
                ],
                out_specs=pl.BlockSpec((Mp, Np), lambda i: (0, 0)),
            ),
            compiler_params=pltpu.CompilerParams(
                dimension_semantics=("arbitrary",),
                vmem_limit_bytes=_VMEM_LIMIT,
            ),
            cost_estimate=cost,
        )(xp, wp)
    else:
        # Keep x VMEM-resident per M tile when it fits; slice K in-kernel.
        x_resident = 2 * tm * Kp * itemsize <= _X_RESIDENT_BYTES
        if x_resident:
            x_spec = pl.BlockSpec((tm, Kp), lambda i, j, k: (i, 0))
        else:
            x_spec = pl.BlockSpec((tm, tk), lambda i, j, k: (i, k))

        out = pl.pallas_call(
            _make_matmul_kernel(tk, x_resident),
            out_shape=jax.ShapeDtypeStruct((Mp, Np), x.dtype),
            grid_spec=pltpu.PrefetchScalarGridSpec(
                num_scalar_prefetch=0,
                grid=(n_m, n_n, n_k),          # reduction axis last
                in_specs=[
                    x_spec,
                    pl.BlockSpec((tn, tk), lambda i, j, k: (j, k)),
                ],
                out_specs=pl.BlockSpec((tm, tn), lambda i, j, k: (i, j)),
            ),
            compiler_params=pltpu.CompilerParams(
                dimension_semantics=("parallel", "parallel", "arbitrary"),
                vmem_limit_bytes=_VMEM_LIMIT,
            ),
            cost_estimate=cost,
        )(xp, wp)

    if Mp != M or Np != N:
        out = out[:M, :N]
    return out


# ---------------------------------------------------------------------------
# HiddenLayer API.
# ---------------------------------------------------------------------------
def hidden_layer_forward(x, W):
    """Pallas implementation of HiddenLayer.forward."""
    B, I = x.shape
    if W.ndim == 3:
        S, O, Iw = W.shape
        assert Iw == I
        # Free contiguous reshape: W (S,O,I) -> (S*O, I).  No transpose, no
        # extra HBM pass over W; the kernel contracts on W's last (lane) dim.
        w2d = W.reshape(S * O, I)
        out = _pallas_matmul_nt(x, w2d)        # (B, S*O)
        return out.reshape(B, S, O)
    else:
        O, Iw = W.shape
        assert Iw == I
        return _pallas_matmul_nt(x, W)         # (B, O)


def init_hidden_layer_weight(key, weights_shape):
    """Deterministic uniform(-W_bound, W_bound) init, matching __init__."""
    w_bound = math.sqrt(6.0 / (weights_shape[-2] * weights_shape[-1]))
    return jax.random.uniform(
        key, weights_shape, dtype=jnp.float32, minval=-w_bound, maxval=w_bound
    )


def hidden_layer_cost(W, gamma=0.01):
    # Regularization cost (plain JAX glue; not the hot path).
    return gamma * jnp.mean(jnp.abs(W))


if __name__ == "__main__":
    key = jax.random.PRNGKey(0)
    k_x, k_w3, k_w2, k_x3, k_w3c, k_x4, k_w4, k_x5, k_w5 = jax.random.split(key, 9)

    # --- Small shapes (single-block fast path) -------------------------------
    B, I, S, O = 8, 32, 4, 16
    x = jax.random.normal(k_x, (B, I), dtype=jnp.float32)

    # 3-D weight: einsum('bi,soi->bso')
    W3 = init_hidden_layer_weight(k_w3, (S, O, I))
    out3 = jax.block_until_ready(hidden_layer_forward(x, W3))
    ref3 = jnp.einsum("bi,soi->bso", x, W3)
    assert out3.shape == (B, S, O)
    assert jnp.allclose(out3, ref3, atol=1e-5, rtol=1e-5)

    # 2-D weight: x @ W.T
    W2 = init_hidden_layer_weight(k_w2, (O, I))
    out2 = jax.block_until_ready(hidden_layer_forward(x, W2))
    ref2 = x @ W2.T
    assert out2.shape == (B, O)
    assert jnp.allclose(out2, ref2, atol=1e-5, rtol=1e-5)

    # --- Odd shapes (fast path + padding/slice-off) ---------------------------
    B3, I3, S3, O3 = 5, 100, 2, 33
    x3 = jax.random.normal(k_x3, (B3, I3), dtype=jnp.float32)
    W3c = init_hidden_layer_weight(k_w3c, (S3, O3, I3))
    out3c = jax.block_until_ready(hidden_layer_forward(x3, W3c))
    ref3c = jnp.einsum("bi,soi->bso", x3, W3c)
    assert out3c.shape == (B3, S3, O3)
    assert jnp.allclose(out3c, ref3c, atol=1e-5, rtol=1e-5)

    # --- Larger shape (general path: K accumulation + N tiling, no padding) --
    B4, I4, S4, O4 = 8, 1408, 3, 384
    x4 = jax.random.normal(k_x4, (B4, I4), dtype=jnp.float32)
    W4 = init_hidden_layer_weight(k_w4, (S4, O4, I4))
    out4 = jax.block_until_ready(hidden_layer_forward(x4, W4))
    ref4 = jnp.einsum("bi,soi->bso", x4, W4)
    assert out4.shape == (B4, S4, O4)
    assert jnp.allclose(out4, ref4, atol=2e-4, rtol=2e-3)

    # --- General path with padding on M/K/N and zero-padded K accumulation ---
    B5, I5, S5, O5 = 5, 1100, 2, 300
    x5 = jax.random.normal(k_x5, (B5, I5), dtype=jnp.float32)
    W5 = init_hidden_layer_weight(k_w5, (S5, O5, I5))
    out5 = jax.block_until_ready(hidden_layer_forward(x5, W5))
    ref5 = jnp.einsum("bi,soi->bso", x5, W5)
    assert out5.shape == (B5, S5, O5)
    assert jnp.allclose(out5, ref5, atol=2e-4, rtol=2e-3)

    # cost (sanity, plain JAX)
    _ = jax.block_until_ready(hidden_layer_cost(W3))

    print("KERNEL_OK")
</pallas_src>

<mosaic_0001>
module attributes {stable_mosaic.version = 11 : i64} {
  func.func @_single_block_kernel(%arg0: i32, %arg1: memref<8x128xf32, #tpu.memory_space<vmem>>, %arg2: memref<128x128xf32, #tpu.memory_space<vmem>>, %arg3: memref<8x128xf32, #tpu.memory_space<vmem>>) attributes {dimension_semantics = [#tpu.dimension_semantics<arbitrary>], iteration_bounds = array<i64: 1>, scalar_prefetch = 0 : i64, scratch_operands = 0 : i64, tpu.core_type = #tpu.core_type<tc>, window_params = [{pipeline_mode = #tpu.pipeline_mode<synchronous>, transform_indices = @transform_0, window_bounds = array<i64: 8, 128>}, {pipeline_mode = #tpu.pipeline_mode<synchronous>, transform_indices = @transform_1, window_bounds = array<i64: 128, 128>}, {pipeline_mode = #tpu.pipeline_mode<synchronous>, transform_indices = @transform_2, window_bounds = array<i64: 8, 128>}]} {
    %c0 = arith.constant 0 : index
    %c0_0 = arith.constant 0 : index
    %0 = vector.load %arg1[%c0, %c0_0] : memref<8x128xf32, #tpu.memory_space<vmem>>, vector<8x128xf32>
    %c0_1 = arith.constant 0 : index
    %c0_2 = arith.constant 0 : index
    %1 = vector.load %arg2[%c0_1, %c0_2] : memref<128x128xf32, #tpu.memory_space<vmem>>, vector<128x128xf32>
    %cst = arith.constant dense<0.000000e+00> : vector<8x128xf32>
    %2 = tpu.matmul %0, %1, %cst {dimension_numbers = #tpu.dot_dimension_numbers<[1], [1], [0], [0], [0, 0, 1, 0], [], []>} : vector<8x128xf32>, vector<128x128xf32>, vector<8x128xf32> -> vector<8x128xf32>
    %c0_3 = arith.constant 0 : index
    %c0_4 = arith.constant 0 : index
    %3 = vector.load %arg3[%c0_3, %c0_4] : memref<8x128xf32, #tpu.memory_space<vmem>>, vector<8x128xf32>
    tpu.vector_store %arg3[%c0_3, %c0_4], %2 {strides = array<i32>} : memref<8x128xf32, #tpu.memory_space<vmem>>, vector<8x128xf32>,
    return
  }
  func.func @transform_0(%arg0: i32) -> (i32, i32) {
    %c0_i32 = arith.constant 0 : i32
    %c0_i32_0 = arith.constant 0 : i32
    %c0_i32_1 = arith.constant 0 : i32
    return %c0_i32, %c0_i32_0 : i32, i32
  }
  func.func @transform_1(%arg0: i32) -> (i32, i32) {
    %c0_i32 = arith.constant 0 : i32
    %c0_i32_0 = arith.constant 0 : i32
    %c0_i32_1 = arith.constant 0 : i32
    return %c0_i32, %c0_i32_0 : i32, i32
  }
  func.func @transform_2(%arg0: i32) -> (i32, i32) {
    %c0_i32 = arith.constant 0 : i32
    %c0_i32_0 = arith.constant 0 : i32
    %c0_i32_1 = arith.constant 0 : i32
    return %c0_i32, %c0_i32_0 : i32, i32
  }
}

</mosaic_0001>

<llo_original>
// kernel: tpu_custom_call.1
$region0: #{tpu_custom_call.1}
  #allocation0 [shape = 'u32[]', space=smem, size = 0x4, offset = 0x4, fixed_abs, tag = 'smem constant byte address 0x4 - core index']
  #allocation1 [shape = 'u32[72,128]{1,0:T(1,128)}', space=vmem, size = 0x9000, scoped, tag = 'internal scratch']
  %s0 = inlined_call_operand.hbm [shape: f32[8,128], index: 0, kind: input, shape index: {}]
  %s1 = inlined_call_operand.hbm [shape: f32[128,128], index: 1, kind: input, shape index: {}]
  %s2 = inlined_call_operand.hbm [shape: f32[8,128], index: 2, kind: output, shape index: {}]
  %s3 = sld [smem:[#allocation0]]
  $region26: #{tpu_custom_call.1} parent=0
    _
  %s5 = ssub.s32 1, %s3
  %s6 = scalar_select 0, %s5, %s3
  $region1: #{tpu_custom_call.1} parent=0
    #allocation2 [shape = 'u8[4096]{0}', space=vmem, size = 0x1000, scoped, tag = 'input window, operand 0, single buffered']
    #allocation3 [shape = 's32[1]{0}', space=sflag, size = 0x4, scoped, tag = 'scoped memory for tpu_custom_call.1']
    #allocation4 [shape = 's32[1]{0}', space=sflag, size = 0x4, scoped, tag = 'scoped memory for tpu_custom_call.1']
    #allocation5 [shape = 'u8[65536]{0}', space=vmem, size = 0x10000, scoped, tag = 'input window, operand 1, single buffered']
    #allocation6 [shape = 's32[1]{0}', space=sflag, size = 0x4, scoped, tag = 'scoped memory for tpu_custom_call.1']
    #allocation7 [shape = 'u8[4096]{0}', space=vmem, size = 0x1000, scoped, tag = 'output window, operand 0, single buffered']
    %7 = vsyncpa [#allocation3], 0
    %8 = vsyncpa [#allocation6], 0
    %9 = vsyncpa [#allocation4], 0
    // Predicated region
    $region2: #{tpu_custom_call.1} parent=1 // pred_check
      _
    $region3: #{tpu_custom_call.1} parent=1 // pred_check_branch
      %11 = sbr.rel (0) target = $region5
    $region4: #{tpu_custom_call.1} parent=1 // pred_region
      %13 = vsyncadd [#allocation3], 0
      %s15 = sshll.u32 %s0, 4
      %s16 = int_to_ptr.hbm [resolvable:$true] %s15
      %s17 = sshll.u32 [#allocation2], 4
      %s18 = int_to_ptr.vmem [resolvable:$true] %s17
      %20 = dma.hbm_to_vmem [thread:$0]  %s16, 128, %s18, [#allocation3]
    $region5: #{tpu_custom_call.1} parent=1 // pred_fallthru
      _
    // Predicated region
    $region6: #{tpu_custom_call.1} parent=1 // pred_check
      _
    $region7: #{tpu_custom_call.1} parent=1 // pred_check_branch
      %22 = sbr.rel (0) target = $region9
    $region8: #{tpu_custom_call.1} parent=1 // pred_region
      %24 = vsyncadd [#allocation6], 0
      %s25 = sshll.u32 %s1, 4
      %s26 = int_to_ptr.hbm [resolvable:$true] %s25
      %s27 = sshll.u32 [#allocation5], 4
      %s28 = int_to_ptr.vmem [resolvable:$true] %s27
      %33 = dma.hbm_to_vmem [thread:$0]  %s26, 2048, %s28, [#allocation6], 128, 128, 8
    $region9: #{tpu_custom_call.1} parent=1 // pred_fallthru
      _
    // Predicated region
    $region10: #{tpu_custom_call.1} parent=1 // pred_check
      _
    $region11: #{tpu_custom_call.1} parent=1 // pred_check_branch
      %35 = sbr.rel (0) target = $region13
    $region12: #{tpu_custom_call.1} parent=1 // pred_region
      %37 = dma.done [#allocation3], 128
    $region13: #{tpu_custom_call.1} parent=1 // pred_fallthru
      _
    // Predicated region
    $region14: #{tpu_custom_call.1} parent=1 // pred_check
      _
    $region15: #{tpu_custom_call.1} parent=1 // pred_check_branch
      %39 = sbr.rel (0) target = $region17
    $region16: #{tpu_custom_call.1} parent=1 // pred_region
      %41 = dma.done [#allocation6], 2048
    $region17: #{tpu_custom_call.1} parent=1 // pred_fallthru
      _
    %v42 = vld [vmem:[#allocation2] sm:$0xff]
    %v43 = vld [vmem:[#allocation5] sm:$0xff]
    %v44 = vld [vmem:[#allocation5 + $0x8] sm:$0xff]
    %v45 = vld [vmem:[#allocation5 + $0x10] sm:$0xff]
    %v46 = vld [vmem:[#allocation5 + $0x18] sm:$0xff]
    %v47 = vld [vmem:[#allocation5 + $0x20] sm:$0xff]
    %v48 = vld [vmem:[#allocation5 + $0x28] sm:$0xff]
    %v49 = vld [vmem:[#allocation5 + $0x30] sm:$0xff]
    %v50 = vld [vmem:[#allocation5 + $0x38] sm:$0xff]
    %v51 = vld [vmem:[#allocation5 + $0x40] sm:$0xff]
    %v52 = vld [vmem:[#allocation5 + $0x48] sm:$0xff]
    %v53 = vld [vmem:[#allocation5 + $0x50] sm:$0xff]
    %v54 = vld [vmem:[#allocation5 + $0x58] sm:$0xff]
    %v55 = vld [vmem:[#allocation5 + $0x60] sm:$0xff]
    %v56 = vld [vmem:[#allocation5 + $0x68] sm:$0xff]
    %v57 = vld [vmem:[#allocation5 + $0x70] sm:$0xff]
    %v58 = vld [vmem:[#allocation5 + $0x78] sm:$0xff]
    %59 = vmatpush.xpose.msra.mxu0 %v58
    %60 = vmatpush.xpose.msra.mxu0 %v57
    %61 = vmatpush.xpose.msra.mxu0 %v56
    %62 = vmatpush.xpose.msra.mxu0 %v55
    %63 = vmatpush.xpose.msra.mxu0 %v54
    %64 = vmatpush.xpose.msra.mxu0 %v53
    %65 = vmatpush.xpose.msra.mxu0 %v52
    %66 = vmatpush.xpose.msra.mxu0 %v51
    %67 = vmatpush.xpose.msra.mxu0 %v50
    %68 = vmatpush.xpose.msra.mxu0 %v49
    %69 = vmatpush.xpose.msra.mxu0 %v48
    %70 = vmatpush.xpose.msra.mxu0 %v47
    %71 = vmatpush.xpose.msra.mxu0 %v46
    %72 = vmatpush.xpose.msra.mxu0 %v45
    %73 = vmatpush.xpose.msra.mxu0 %v44
    %74 = vmatpush.xpose.msra.mxu0 %v43
    %75 = vmatmul.f32.gmra.mxu0 %v42
    %v76 = vpop.f32.mrf.mxu0
    %v77 = vadd.f32 0.0, %v76
    %78 = vdwg.mxu0
    %79 = vst [vmem:[#allocation7] sm:$0xff] %v77
    // Predicated region
    $region18: #{tpu_custom_call.1} parent=1 // pred_check
      _
    $region19: #{tpu_custom_call.1} parent=1 // pred_check_branch
      %81 = sbr.rel (0) target = $region21
    $region20: #{tpu_custom_call.1} parent=1 // pred_region
      %83 = vsyncadd [#allocation4], 0
      %s85 = sshll.u32 [#allocation7], 4
      %s86 = int_to_ptr.vmem [resolvable:$true] %s85
      %s87 = sshll.u32 %s2, 4
      %s88 = int_to_ptr.hbm [resolvable:$true] %s87
      %90 = dma.vmem_to_hbm [thread:$0]  %s86, 128, %s88, [#allocation4]
    $region21: #{tpu_custom_call.1} parent=1 // pred_fallthru
      _
    // Predicated region
    $region22: #{tpu_custom_call.1} parent=1 // pred_check
      _
    $region23: #{tpu_custom_call.1} parent=1 // pred_check_branch
      %92 = sbr.rel (0) target = $region25
    $region24: #{tpu_custom_call.1} parent=1 // pred_region
      %94 = dma.done [#allocation4], 128
    $region25: #{tpu_custom_call.1} parent=1 // pred_fallthru
      _
    %95 = vsyncpa [#allocation3], 1
    %96 = vsyncpa [#allocation6], 1
    %97 = vsyncpa [#allocation4], 1

</llo_original>
